<compile_context>
chip_gen: v7x
topology: tpu7x:2x2x1
jax: 0.10.0
libtpu: 0.0.40
codegen_flags: <defaults>
</compile_context>

<pallas_src>
import jax
import jax.numpy as jnp
from jax import lax
from jax.experimental import pallas as pl
from jax.experimental.pallas import tpu as pltpu


# ------------------------------ host wrapper -------------------------------

def vanilla_relu_rnn_tanh(x, lengths, w_ih_list, w_hh_list, w_fc):
    """x: (B, T, input_size) f32, lengths: (B,) int (sorted descending).

    Weights are stored already transposed for right-multiplication:
      w_ih_list[l]: (Din_l, H), w_hh_list[l]: (H, H), w_fc: (H, O).
    Returns (B*T, O) f32, matching the PyTorch module's forward.
    """
    B, T, Din = x.shape
    H = w_hh_list[0].shape[0]
    O = w_fc.shape[1]
    L = len(w_ih_list)

    # Two batch blocks when possible so v7x's two TensorCores both get work;
    # all rows within a block are folded into the MXU matmuls (M = b_tile).
    num_blocks = 2 if (B >= 2 and B % 2 == 0) else 1
    b_tile = B // num_blocks
    assert b_tile * num_blocks == B
    assert (b_tile * T) % 8 == 0 or b_tile * T == B * T  # out-block sublane rule

    weights = []
    for l in range(L):
        weights.append(w_ih_list[l].astype(jnp.float32))
        weights.append(w_hh_list[l].astype(jnp.float32))
    weights.append(w_fc.astype(jnp.float32))   # fc2 weight last

    def kernel(len_ref, x_ref, *refs):
        w_refs = refs[:2 * L + 1]
        out_ref = refs[2 * L + 1]
        seq_ref = refs[2 * L + 2]              # VMEM (b_tile, T, H) f32 scratch

        i = pl.program_id(0)

        # Per-row lengths of this batch block as a (b_tile, 1) int32 vector,
        # built from SMEM scalars with scalar-broadcast selects (b_tile small).
        row_iota = lax.broadcasted_iota(jnp.int32, (b_tile, 1), 0)
        lens = jnp.zeros((b_tile, 1), jnp.int32)
        for b in range(b_tile):
            lens = jnp.where(row_iota == b, len_ref[i * b_tile + b], lens)

        # Layer-0 input, flattened to batch-major rows (row index = b*T + t).
        seq2d = x_ref[...].reshape(b_tile * T, Din).astype(jnp.float32)

        for l in range(L):
            w_ih = w_refs[2 * l][...]
            w_hh = w_refs[2 * l + 1][...]
            last = (l == L - 1)

            # Hoisted input projection: one matmul for every (b, t) row.
            xw = jnp.dot(seq2d, w_ih, preferred_element_type=jnp.float32)
            xw3 = xw.reshape(b_tile, T, H)

            h = jnp.zeros((b_tile, H), jnp.float32)   # value-carried hidden
            for t in range(T):                         # T static -> unrolled
                pre = xw3[:, t, :] + jnp.dot(
                    h, w_hh, preferred_element_type=jnp.float32)
                new_h = jnp.maximum(pre, 0.0)          # ReLU nonlinearity
                live = lens > t                        # (b_tile, 1) bool
                # Critical path: matmul -> relu -> select -> next matmul.
                h = jnp.where(live, new_h, h)          # freeze h past length
                # Off the critical path: record this timestep's output.  On
                # the last layer padded steps are zeroed here with a select
                # (NaN/Inf in padded x can never leak), matching
                # pad_packed_sequence.
                out_t = jnp.where(live, new_h, 0.0) if last else new_h
                seq_ref[:, pl.ds(t, 1), :] = out_t.reshape(b_tile, 1, H)
            seq2d = seq_ref[...].reshape(b_tile * T, H)

        # Fused fc2 (no bias) + tanh epilogue; block rows are already b*T + t.
        y = jnp.dot(seq2d, w_refs[2 * L][...], preferred_element_type=jnp.float32)
        out_ref[...] = jnp.tanh(y).astype(out_ref.dtype)

    in_specs = [pl.BlockSpec((b_tile, T, Din), lambda i, lens_ref: (i, 0, 0))]
    for w in weights:
        r, c = w.shape
        in_specs.append(pl.BlockSpec((r, c), lambda i, lens_ref: (0, 0)))  # resident

    grid_spec = pltpu.PrefetchScalarGridSpec(
        num_scalar_prefetch=1,                 # lengths -> SMEM
        grid=(num_blocks,),
        in_specs=in_specs,
        out_specs=pl.BlockSpec((b_tile * T, O), lambda i, lens_ref: (i, 0)),
        scratch_shapes=[pltpu.VMEM((b_tile, T, H), jnp.float32)],
    )

    return pl.pallas_call(
        kernel,
        out_shape=jax.ShapeDtypeStruct((B * T, O), jnp.float32),
        grid_spec=grid_spec,
        compiler_params=pltpu.CompilerParams(
            dimension_semantics=("parallel",)),  # batch blocks independent
    )(lengths.astype(jnp.int32), x.astype(jnp.float32), *weights)


# ------------------------------- reference ---------------------------------

def reference_forward(x, lengths, w_ih_list, w_hh_list, w_fc):
    B, T, _ = x.shape
    H = w_hh_list[0].shape[0]
    seq = x.astype(jnp.float32)
    for layer in range(len(w_ih_list)):
        h = jnp.zeros((B, H), jnp.float32)
        outs = []
        for t in range(T):
            pre = seq[:, t, :] @ w_ih_list[layer] + h @ w_hh_list[layer]
            new_h = jnp.maximum(pre, 0.0)
            valid = (lengths > t).reshape(B, 1)
            h = jnp.where(valid, new_h, h)
            outs.append(jnp.where(valid, new_h, 0.0))
        seq = jnp.stack(outs, axis=1)  # (B, T, H)
    flat = seq.reshape(B * T, H)
    return jnp.tanh(flat @ w_fc)


# --------------------------------- main -------------------------------------

if __name__ == "__main__":
    # Small shapes consistent with the module: batch=2, seq=8, input=4, hidden=32, out=2
    B, T = 2, 8
    input_size, hidden_size, num_layers, output_size = 4, 32, 1, 2

    key = jax.random.PRNGKey(0)
    k_x, k_ih, k_hh, k_fc = jax.random.split(key, 4)

    x = jax.random.normal(k_x, (B, T, input_size), dtype=jnp.float32)
    lengths = jnp.array([8, 5], dtype=jnp.int32)   # sorted descending (pack_padded_sequence)

    # PyTorch-style U(-1/sqrt(H), 1/sqrt(H)) init, stored transposed for right-mult.
    bound = 1.0 / jnp.sqrt(jnp.float32(hidden_size))
    w_ih_list, w_hh_list = [], []
    for layer in range(num_layers):
        k_ih, k1 = jax.random.split(k_ih)
        k_hh, k2 = jax.random.split(k_hh)
        din = input_size if layer == 0 else hidden_size
        w_ih_list.append(jax.random.uniform(k1, (din, hidden_size), jnp.float32, -bound, bound))
        w_hh_list.append(jax.random.uniform(k2, (hidden_size, hidden_size), jnp.float32, -bound, bound))
    w_fc = jax.random.uniform(k_fc, (hidden_size, output_size), jnp.float32, -bound, bound)

    out = vanilla_relu_rnn_tanh(x, lengths, w_ih_list, w_hh_list, w_fc)
    out = jax.block_until_ready(out)

    ref = reference_forward(x, lengths, w_ih_list, w_hh_list, w_fc)
    assert out.shape == (B * T, output_size)
    assert jnp.allclose(out, ref, atol=1e-5, rtol=1e-5), "mismatch vs. pure-JAX reference"

    print("KERNEL_OK")
</pallas_src>

<mosaic_0001>
module attributes {stable_mosaic.version = 11 : i64} {
  func.func @kernel(%arg0: i32, %arg1: memref<2xi32, #tpu.memory_space<smem>>, %arg2: memref<1x8x4xf32, #tpu.memory_space<vmem>>, %arg3: memref<4x32xf32, #tpu.memory_space<vmem>>, %arg4: memref<32x32xf32, #tpu.memory_space<vmem>>, %arg5: memref<32x2xf32, #tpu.memory_space<vmem>>, %arg6: memref<8x2xf32, #tpu.memory_space<vmem>>, %arg7: memref<1x8x32xf32, #tpu.memory_space<vmem>>) attributes {dimension_semantics = [#tpu.dimension_semantics<parallel>], iteration_bounds = array<i64: 2>, scalar_prefetch = 1 : i64, scratch_operands = 1 : i64, tpu.core_type = #tpu.core_type<tc>, window_params = [{transform_indices = @transform_0, window_bounds = array<i64: 1, 8, 4>}, {pipeline_mode = #tpu.pipeline_mode<synchronous>, transform_indices = @transform_1, window_bounds = array<i64: 4, 32>}, {pipeline_mode = #tpu.pipeline_mode<synchronous>, transform_indices = @transform_2, window_bounds = array<i64: 32, 32>}, {pipeline_mode = #tpu.pipeline_mode<synchronous>, transform_indices = @transform_3, window_bounds = array<i64: 32, 2>}, {transform_indices = @transform_4, window_bounds = array<i64: 8, 2>}]} {
    %0 = tpu.iota {dimensions = array<i32: 0>} : vector<1x1xi32>
    %c0_i32 = arith.constant 0 : i32
    %1 = vector.broadcast %c0_i32 : i32 to vector<1x1xi32>
    %c0_i32_0 = arith.constant 0 : i32
    %2 = vector.broadcast %c0_i32_0 : i32 to vector<1x1xi32>
    %3 = arith.cmpi eq, %0, %2 : vector<1x1xi32>
    %c1_i32 = arith.constant 1 : i32
    %4 = arith.muli %arg0, %c1_i32 : i32
    %c0_i32_1 = arith.constant 0 : i32
    %5 = arith.addi %4, %c0_i32_1 : i32
    %6 = arith.index_cast %5 : i32 to index
    %7 = memref.load %arg1[%6] : memref<2xi32, #tpu.memory_space<smem>>
    %8 = vector.broadcast %7 : i32 to vector<1x1xi32>
    %9 = arith.select %3, %8, %1 : vector<1x1xi1>, vector<1x1xi32>
    %c0 = arith.constant 0 : index
    %c0_2 = arith.constant 0 : index
    %c0_3 = arith.constant 0 : index
    %10 = vector.load %arg2[%c0, %c0_2, %c0_3] : memref<1x8x4xf32, #tpu.memory_space<vmem>>, vector<1x8x4xf32>
    %11 = vector.shape_cast %10 : vector<1x8x4xf32> to vector<8x4xf32>
    %c0_4 = arith.constant 0 : index
    %c0_5 = arith.constant 0 : index
    %12 = vector.load %arg3[%c0_4, %c0_5] : memref<4x32xf32, #tpu.memory_space<vmem>>, vector<4x32xf32>
    %c0_6 = arith.constant 0 : index
    %c0_7 = arith.constant 0 : index
    %13 = vector.load %arg4[%c0_6, %c0_7] : memref<32x32xf32, #tpu.memory_space<vmem>>, vector<32x32xf32>
    %cst = arith.constant dense<0.000000e+00> : vector<8x32xf32>
    %14 = tpu.matmul %11, %12, %cst {dimension_numbers = #tpu.dot_dimension_numbers<[1], [0], [0], [1], [0, 0, 1, 1], [], []>} : vector<8x4xf32>, vector<4x32xf32>, vector<8x32xf32> -> vector<8x32xf32>
    %15 = vector.shape_cast %14 : vector<8x32xf32> to vector<1x8x32xf32>
    %cst_8 = arith.constant 0.000000e+00 : f32
    %16 = vector.broadcast %cst_8 : f32 to vector<1x32xf32>
    %17 = vector.extract_strided_slice %15 {offsets = [0, 0, 0], sizes = [1, 1, 32], strides = [1, 1, 1]} : vector<1x8x32xf32> to vector<1x1x32xf32>
    %18 = vector.shape_cast %17 : vector<1x1x32xf32> to vector<1x32xf32>
    %cst_9 = arith.constant dense<0.000000e+00> : vector<1x32xf32>
    %19 = tpu.matmul %16, %13, %cst_9 {dimension_numbers = #tpu.dot_dimension_numbers<[1], [0], [0], [1], [0, 0, 1, 1], [], []>} : vector<1x32xf32>, vector<32x32xf32>, vector<1x32xf32> -> vector<1x32xf32>
    %20 = arith.addf %18, %19 : vector<1x32xf32>
    %cst_10 = arith.constant 0.000000e+00 : f32
    %21 = vector.broadcast %cst_10 : f32 to vector<1x32xf32>
    %22 = arith.maximumf %20, %21 : vector<1x32xf32>
    %c0_i32_11 = arith.constant 0 : i32
    %23 = vector.broadcast %c0_i32_11 : i32 to vector<1x1xi32>
    %24 = arith.cmpi sgt, %9, %23 : vector<1x1xi32>
    %25 = vector.shape_cast %24 : vector<1x1xi1> to vector<1x1xi1>
    %26 = vector.broadcast %25 : vector<1x1xi1> to vector<1x32xi1>
    %27 = arith.select %26, %22, %16 : vector<1x32xi1>, vector<1x32xf32>
    %cst_12 = arith.constant 0.000000e+00 : f32
    %28 = vector.shape_cast %24 : vector<1x1xi1> to vector<1x1xi1>
    %29 = vector.broadcast %28 : vector<1x1xi1> to vector<1x32xi1>
    %30 = vector.broadcast %cst_12 : f32 to vector<1x32xf32>
    %31 = arith.select %29, %22, %30 : vector<1x32xi1>, vector<1x32xf32>
    %32 = vector.shape_cast %31 : vector<1x32xf32> to vector<1x1x32xf32>
    %c0_13 = arith.constant 0 : index
    %c0_14 = arith.constant 0 : index
    %c0_15 = arith.constant 0 : index
    %33 = vector.load %arg7[%c0_13, %c0_14, %c0_15] : memref<1x8x32xf32, #tpu.memory_space<vmem>>, vector<1x1x32xf32>
    tpu.vector_store %arg7[%c0_13, %c0_14, %c0_15], %32 {strides = array<i32>} : memref<1x8x32xf32, #tpu.memory_space<vmem>>, vector<1x1x32xf32>,
    %34 = vector.extract_strided_slice %15 {offsets = [0, 1, 0], sizes = [1, 1, 32], strides = [1, 1, 1]} : vector<1x8x32xf32> to vector<1x1x32xf32>
    %35 = vector.shape_cast %34 : vector<1x1x32xf32> to vector<1x32xf32>
    %cst_16 = arith.constant dense<0.000000e+00> : vector<1x32xf32>
    %36 = tpu.matmul %27, %13, %cst_16 {dimension_numbers = #tpu.dot_dimension_numbers<[1], [0], [0], [1], [0, 0, 1, 1], [], []>} : vector<1x32xf32>, vector<32x32xf32>, vector<1x32xf32> -> vector<1x32xf32>
    %37 = arith.addf %35, %36 : vector<1x32xf32>
    %cst_17 = arith.constant 0.000000e+00 : f32
    %38 = vector.broadcast %cst_17 : f32 to vector<1x32xf32>
    %39 = arith.maximumf %37, %38 : vector<1x32xf32>
    %c1_i32_18 = arith.constant 1 : i32
    %40 = vector.broadcast %c1_i32_18 : i32 to vector<1x1xi32>
    %41 = arith.cmpi sgt, %9, %40 : vector<1x1xi32>
    %42 = vector.shape_cast %41 : vector<1x1xi1> to vector<1x1xi1>
    %43 = vector.broadcast %42 : vector<1x1xi1> to vector<1x32xi1>
    %44 = arith.select %43, %39, %27 : vector<1x32xi1>, vector<1x32xf32>
    %cst_19 = arith.constant 0.000000e+00 : f32
    %45 = vector.shape_cast %41 : vector<1x1xi1> to vector<1x1xi1>
    %46 = vector.broadcast %45 : vector<1x1xi1> to vector<1x32xi1>
    %47 = vector.broadcast %cst_19 : f32 to vector<1x32xf32>
    %48 = arith.select %46, %39, %47 : vector<1x32xi1>, vector<1x32xf32>
    %49 = vector.shape_cast %48 : vector<1x32xf32> to vector<1x1x32xf32>
    %c0_20 = arith.constant 0 : index
    %c1 = arith.constant 1 : index
    %c0_21 = arith.constant 0 : index
    %50 = vector.load %arg7[%c0_20, %c1, %c0_21] : memref<1x8x32xf32, #tpu.memory_space<vmem>>, vector<1x1x32xf32>
    tpu.vector_store %arg7[%c0_20, %c1, %c0_21], %49 {strides = array<i32>} : memref<1x8x32xf32, #tpu.memory_space<vmem>>, vector<1x1x32xf32>,
    %51 = vector.extract_strided_slice %15 {offsets = [0, 2, 0], sizes = [1, 1, 32], strides = [1, 1, 1]} : vector<1x8x32xf32> to vector<1x1x32xf32>
    %52 = vector.shape_cast %51 : vector<1x1x32xf32> to vector<1x32xf32>
    %cst_22 = arith.constant dense<0.000000e+00> : vector<1x32xf32>
    %53 = tpu.matmul %44, %13, %cst_22 {dimension_numbers = #tpu.dot_dimension_numbers<[1], [0], [0], [1], [0, 0, 1, 1], [], []>} : vector<1x32xf32>, vector<32x32xf32>, vector<1x32xf32> -> vector<1x32xf32>
    %54 = arith.addf %52, %53 : vector<1x32xf32>
    %cst_23 = arith.constant 0.000000e+00 : f32
    %55 = vector.broadcast %cst_23 : f32 to vector<1x32xf32>
    %56 = arith.maximumf %54, %55 : vector<1x32xf32>
    %c2_i32 = arith.constant 2 : i32
    %57 = vector.broadcast %c2_i32 : i32 to vector<1x1xi32>
    %58 = arith.cmpi sgt, %9, %57 : vector<1x1xi32>
    %59 = vector.shape_cast %58 : vector<1x1xi1> to vector<1x1xi1>
    %60 = vector.broadcast %59 : vector<1x1xi1> to vector<1x32xi1>
    %61 = arith.select %60, %56, %44 : vector<1x32xi1>, vector<1x32xf32>
    %cst_24 = arith.constant 0.000000e+00 : f32
    %62 = vector.shape_cast %58 : vector<1x1xi1> to vector<1x1xi1>
    %63 = vector.broadcast %62 : vector<1x1xi1> to vector<1x32xi1>
    %64 = vector.broadcast %cst_24 : f32 to vector<1x32xf32>
    %65 = arith.select %63, %56, %64 : vector<1x32xi1>, vector<1x32xf32>
    %66 = vector.shape_cast %65 : vector<1x32xf32> to vector<1x1x32xf32>
    %c0_25 = arith.constant 0 : index
    %c2 = arith.constant 2 : index
    %c0_26 = arith.constant 0 : index
    %67 = vector.load %arg7[%c0_25, %c2, %c0_26] : memref<1x8x32xf32, #tpu.memory_space<vmem>>, vector<1x1x32xf32>
    tpu.vector_store %arg7[%c0_25, %c2, %c0_26], %66 {strides = array<i32>} : memref<1x8x32xf32, #tpu.memory_space<vmem>>, vector<1x1x32xf32>,
    %68 = vector.extract_strided_slice %15 {offsets = [0, 3, 0], sizes = [1, 1, 32], strides = [1, 1, 1]} : vector<1x8x32xf32> to vector<1x1x32xf32>
    %69 = vector.shape_cast %68 : vector<1x1x32xf32> to vector<1x32xf32>
    %cst_27 = arith.constant dense<0.000000e+00> : vector<1x32xf32>
    %70 = tpu.matmul %61, %13, %cst_27 {dimension_numbers = #tpu.dot_dimension_numbers<[1], [0], [0], [1], [0, 0, 1, 1], [], []>} : vector<1x32xf32>, vector<32x32xf32>, vector<1x32xf32> -> vector<1x32xf32>
    %71 = arith.addf %69, %70 : vector<1x32xf32>
    %cst_28 = arith.constant 0.000000e+00 : f32
    %72 = vector.broadcast %cst_28 : f32 to vector<1x32xf32>
    %73 = arith.maximumf %71, %72 : vector<1x32xf32>
    %c3_i32 = arith.constant 3 : i32
    %74 = vector.broadcast %c3_i32 : i32 to vector<1x1xi32>
    %75 = arith.cmpi sgt, %9, %74 : vector<1x1xi32>
    %76 = vector.shape_cast %75 : vector<1x1xi1> to vector<1x1xi1>
    %77 = vector.broadcast %76 : vector<1x1xi1> to vector<1x32xi1>
    %78 = arith.select %77, %73, %61 : vector<1x32xi1>, vector<1x32xf32>
    %cst_29 = arith.constant 0.000000e+00 : f32
    %79 = vector.shape_cast %75 : vector<1x1xi1> to vector<1x1xi1>
    %80 = vector.broadcast %79 : vector<1x1xi1> to vector<1x32xi1>
    %81 = vector.broadcast %cst_29 : f32 to vector<1x32xf32>
    %82 = arith.select %80, %73, %81 : vector<1x32xi1>, vector<1x32xf32>
    %83 = vector.shape_cast %82 : vector<1x32xf32> to vector<1x1x32xf32>
    %c0_30 = arith.constant 0 : index
    %c3 = arith.constant 3 : index
    %c0_31 = arith.constant 0 : index
    %84 = vector.load %arg7[%c0_30, %c3, %c0_31] : memref<1x8x32xf32, #tpu.memory_space<vmem>>, vector<1x1x32xf32>
    tpu.vector_store %arg7[%c0_30, %c3, %c0_31], %83 {strides = array<i32>} : memref<1x8x32xf32, #tpu.memory_space<vmem>>, vector<1x1x32xf32>,
    %85 = vector.extract_strided_slice %15 {offsets = [0, 4, 0], sizes = [1, 1, 32], strides = [1, 1, 1]} : vector<1x8x32xf32> to vector<1x1x32xf32>
    %86 = vector.shape_cast %85 : vector<1x1x32xf32> to vector<1x32xf32>
    %cst_32 = arith.constant dense<0.000000e+00> : vector<1x32xf32>
    %87 = tpu.matmul %78, %13, %cst_32 {dimension_numbers = #tpu.dot_dimension_numbers<[1], [0], [0], [1], [0, 0, 1, 1], [], []>} : vector<1x32xf32>, vector<32x32xf32>, vector<1x32xf32> -> vector<1x32xf32>
    %88 = arith.addf %86, %87 : vector<1x32xf32>
    %cst_33 = arith.constant 0.000000e+00 : f32
    %89 = vector.broadcast %cst_33 : f32 to vector<1x32xf32>
    %90 = arith.maximumf %88, %89 : vector<1x32xf32>
    %c4_i32 = arith.constant 4 : i32
    %91 = vector.broadcast %c4_i32 : i32 to vector<1x1xi32>
    %92 = arith.cmpi sgt, %9, %91 : vector<1x1xi32>
    %93 = vector.shape_cast %92 : vector<1x1xi1> to vector<1x1xi1>
    %94 = vector.broadcast %93 : vector<1x1xi1> to vector<1x32xi1>
    %95 = arith.select %94, %90, %78 : vector<1x32xi1>, vector<1x32xf32>
    %cst_34 = arith.constant 0.000000e+00 : f32
    %96 = vector.shape_cast %92 : vector<1x1xi1> to vector<1x1xi1>
    %97 = vector.broadcast %96 : vector<1x1xi1> to vector<1x32xi1>
    %98 = vector.broadcast %cst_34 : f32 to vector<1x32xf32>
    %99 = arith.select %97, %90, %98 : vector<1x32xi1>, vector<1x32xf32>
    %100 = vector.shape_cast %99 : vector<1x32xf32> to vector<1x1x32xf32>
    %c0_35 = arith.constant 0 : index
    %c4 = arith.constant 4 : index
    %c0_36 = arith.constant 0 : index
    %101 = vector.load %arg7[%c0_35, %c4, %c0_36] : memref<1x8x32xf32, #tpu.memory_space<vmem>>, vector<1x1x32xf32>
    tpu.vector_store %arg7[%c0_35, %c4, %c0_36], %100 {strides = array<i32>} : memref<1x8x32xf32, #tpu.memory_space<vmem>>, vector<1x1x32xf32>,
    %102 = vector.extract_strided_slice %15 {offsets = [0, 5, 0], sizes = [1, 1, 32], strides = [1, 1, 1]} : vector<1x8x32xf32> to vector<1x1x32xf32>
    %103 = vector.shape_cast %102 : vector<1x1x32xf32> to vector<1x32xf32>
    %cst_37 = arith.constant dense<0.000000e+00> : vector<1x32xf32>
    %104 = tpu.matmul %95, %13, %cst_37 {dimension_numbers = #tpu.dot_dimension_numbers<[1], [0], [0], [1], [0, 0, 1, 1], [], []>} : vector<1x32xf32>, vector<32x32xf32>, vector<1x32xf32> -> vector<1x32xf32>
    %105 = arith.addf %103, %104 : vector<1x32xf32>
    %cst_38 = arith.constant 0.000000e+00 : f32
    %106 = vector.broadcast %cst_38 : f32 to vector<1x32xf32>
    %107 = arith.maximumf %105, %106 : vector<1x32xf32>
    %c5_i32 = arith.constant 5 : i32
    %108 = vector.broadcast %c5_i32 : i32 to vector<1x1xi32>
    %109 = arith.cmpi sgt, %9, %108 : vector<1x1xi32>
    %110 = vector.shape_cast %109 : vector<1x1xi1> to vector<1x1xi1>
    %111 = vector.broadcast %110 : vector<1x1xi1> to vector<1x32xi1>
    %112 = arith.select %111, %107, %95 : vector<1x32xi1>, vector<1x32xf32>
    %cst_39 = arith.constant 0.000000e+00 : f32
    %113 = vector.shape_cast %109 : vector<1x1xi1> to vector<1x1xi1>
    %114 = vector.broadcast %113 : vector<1x1xi1> to vector<1x32xi1>
    %115 = vector.broadcast %cst_39 : f32 to vector<1x32xf32>
    %116 = arith.select %114, %107, %115 : vector<1x32xi1>, vector<1x32xf32>
    %117 = vector.shape_cast %116 : vector<1x32xf32> to vector<1x1x32xf32>
    %c0_40 = arith.constant 0 : index
    %c5 = arith.constant 5 : index
    %c0_41 = arith.constant 0 : index
    %118 = vector.load %arg7[%c0_40, %c5, %c0_41] : memref<1x8x32xf32, #tpu.memory_space<vmem>>, vector<1x1x32xf32>
    tpu.vector_store %arg7[%c0_40, %c5, %c0_41], %117 {strides = array<i32>} : memref<1x8x32xf32, #tpu.memory_space<vmem>>, vector<1x1x32xf32>,
    %119 = vector.extract_strided_slice %15 {offsets = [0, 6, 0], sizes = [1, 1, 32], strides = [1, 1, 1]} : vector<1x8x32xf32> to vector<1x1x32xf32>
    %120 = vector.shape_cast %119 : vector<1x1x32xf32> to vector<1x32xf32>
    %cst_42 = arith.constant dense<0.000000e+00> : vector<1x32xf32>
    %121 = tpu.matmul %112, %13, %cst_42 {dimension_numbers = #tpu.dot_dimension_numbers<[1], [0], [0], [1], [0, 0, 1, 1], [], []>} : vector<1x32xf32>, vector<32x32xf32>, vector<1x32xf32> -> vector<1x32xf32>
    %122 = arith.addf %120, %121 : vector<1x32xf32>
    %cst_43 = arith.constant 0.000000e+00 : f32
    %123 = vector.broadcast %cst_43 : f32 to vector<1x32xf32>
    %124 = arith.maximumf %122, %123 : vector<1x32xf32>
    %c6_i32 = arith.constant 6 : i32
    %125 = vector.broadcast %c6_i32 : i32 to vector<1x1xi32>
    %126 = arith.cmpi sgt, %9, %125 : vector<1x1xi32>
    %127 = vector.shape_cast %126 : vector<1x1xi1> to vector<1x1xi1>
    %128 = vector.broadcast %127 : vector<1x1xi1> to vector<1x32xi1>
    %129 = arith.select %128, %124, %112 : vector<1x32xi1>, vector<1x32xf32>
    %cst_44 = arith.constant 0.000000e+00 : f32
    %130 = vector.shape_cast %126 : vector<1x1xi1> to vector<1x1xi1>
    %131 = vector.broadcast %130 : vector<1x1xi1> to vector<1x32xi1>
    %132 = vector.broadcast %cst_44 : f32 to vector<1x32xf32>
    %133 = arith.select %131, %124, %132 : vector<1x32xi1>, vector<1x32xf32>
    %134 = vector.shape_cast %133 : vector<1x32xf32> to vector<1x1x32xf32>
    %c0_45 = arith.constant 0 : index
    %c6 = arith.constant 6 : index
    %c0_46 = arith.constant 0 : index
    %135 = vector.load %arg7[%c0_45, %c6, %c0_46] : memref<1x8x32xf32, #tpu.memory_space<vmem>>, vector<1x1x32xf32>
    tpu.vector_store %arg7[%c0_45, %c6, %c0_46], %134 {strides = array<i32>} : memref<1x8x32xf32, #tpu.memory_space<vmem>>, vector<1x1x32xf32>,
    %136 = vector.extract_strided_slice %15 {offsets = [0, 7, 0], sizes = [1, 1, 32], strides = [1, 1, 1]} : vector<1x8x32xf32> to vector<1x1x32xf32>
    %137 = vector.shape_cast %136 : vector<1x1x32xf32> to vector<1x32xf32>
    %cst_47 = arith.constant dense<0.000000e+00> : vector<1x32xf32>
    %138 = tpu.matmul %129, %13, %cst_47 {dimension_numbers = #tpu.dot_dimension_numbers<[1], [0], [0], [1], [0, 0, 1, 1], [], []>} : vector<1x32xf32>, vector<32x32xf32>, vector<1x32xf32> -> vector<1x32xf32>
    %139 = arith.addf %137, %138 : vector<1x32xf32>
    %cst_48 = arith.constant 0.000000e+00 : f32
    %140 = vector.broadcast %cst_48 : f32 to vector<1x32xf32>
    %141 = arith.maximumf %139, %140 : vector<1x32xf32>
    %c7_i32 = arith.constant 7 : i32
    %142 = vector.broadcast %c7_i32 : i32 to vector<1x1xi32>
    %143 = arith.cmpi sgt, %9, %142 : vector<1x1xi32>
    %cst_49 = arith.constant 0.000000e+00 : f32
    %144 = vector.shape_cast %143 : vector<1x1xi1> to vector<1x1xi1>
    %145 = vector.broadcast %144 : vector<1x1xi1> to vector<1x32xi1>
    %146 = vector.broadcast %cst_49 : f32 to vector<1x32xf32>
    %147 = arith.select %145, %141, %146 : vector<1x32xi1>, vector<1x32xf32>
    %148 = vector.shape_cast %147 : vector<1x32xf32> to vector<1x1x32xf32>
    %c0_50 = arith.constant 0 : index
    %c7 = arith.constant 7 : index
    %c0_51 = arith.constant 0 : index
    %149 = vector.load %arg7[%c0_50, %c7, %c0_51] : memref<1x8x32xf32, #tpu.memory_space<vmem>>, vector<1x1x32xf32>
    tpu.vector_store %arg7[%c0_50, %c7, %c0_51], %148 {strides = array<i32>} : memref<1x8x32xf32, #tpu.memory_space<vmem>>, vector<1x1x32xf32>,
    %c0_52 = arith.constant 0 : index
    %c0_53 = arith.constant 0 : index
    %c0_54 = arith.constant 0 : index
    %150 = vector.load %arg7[%c0_52, %c0_53, %c0_54] : memref<1x8x32xf32, #tpu.memory_space<vmem>>, vector<1x8x32xf32>
    %151 = vector.shape_cast %150 : vector<1x8x32xf32> to vector<8x32xf32>
    %c0_55 = arith.constant 0 : index
    %c0_56 = arith.constant 0 : index
    %152 = vector.load %arg5[%c0_55, %c0_56] : memref<32x2xf32, #tpu.memory_space<vmem>>, vector<32x2xf32>
    %cst_57 = arith.constant dense<0.000000e+00> : vector<8x2xf32>
    %153 = tpu.matmul %151, %152, %cst_57 {dimension_numbers = #tpu.dot_dimension_numbers<[1], [0], [0], [1], [0, 0, 1, 1], [], []>} : vector<8x32xf32>, vector<32x2xf32>, vector<8x2xf32> -> vector<8x2xf32>
    %154 = math.tanh %153 : vector<8x2xf32>
    %c0_58 = arith.constant 0 : index
    %c0_59 = arith.constant 0 : index
    %155 = vector.load %arg6[%c0_58, %c0_59] : memref<8x2xf32, #tpu.memory_space<vmem>>, vector<8x2xf32>
    tpu.vector_store %arg6[%c0_58, %c0_59], %154 {strides = array<i32>} : memref<8x2xf32, #tpu.memory_space<vmem>>, vector<8x2xf32>,
    return
  }
  func.func @transform_0(%arg0: i32, %arg1: memref<2xi32, #tpu.memory_space<smem>>) -> (i32, i32, i32) {
    %c0_i32 = arith.constant 0 : i32
    %c0_i32_0 = arith.constant 0 : i32
    %c0_i32_1 = arith.constant 0 : i32
    return %arg0, %c0_i32, %c0_i32_0 : i32, i32, i32
  }
  func.func @transform_1(%arg0: i32, %arg1: memref<2xi32, #tpu.memory_space<smem>>) -> (i32, i32) {
    %c0_i32 = arith.constant 0 : i32
    %c0_i32_0 = arith.constant 0 : i32
    %c0_i32_1 = arith.constant 0 : i32
    return %c0_i32, %c0_i32_0 : i32, i32
  }
  func.func @transform_2(%arg0: i32, %arg1: memref<2xi32, #tpu.memory_space<smem>>) -> (i32, i32) {
    %c0_i32 = arith.constant 0 : i32
    %c0_i32_0 = arith.constant 0 : i32
    %c0_i32_1 = arith.constant 0 : i32
    return %c0_i32, %c0_i32_0 : i32, i32
  }
  func.func @transform_3(%arg0: i32, %arg1: memref<2xi32, #tpu.memory_space<smem>>) -> (i32, i32) {
    %c0_i32 = arith.constant 0 : i32
    %c0_i32_0 = arith.constant 0 : i32
    %c0_i32_1 = arith.constant 0 : i32
    return %c0_i32, %c0_i32_0 : i32, i32
  }
  func.func @transform_4(%arg0: i32, %arg1: memref<2xi32, #tpu.memory_space<smem>>) -> (i32, i32) {
    %c0_i32 = arith.constant 0 : i32
    %c0_i32_0 = arith.constant 0 : i32
    return %arg0, %c0_i32 : i32, i32
  }
}

</mosaic_0001>

<llo_original>
// kernel: tpu_custom_call.1
$region0: #{tpu_custom_call.1}
  #allocation0 [shape = 'u32[]', space=smem, size = 0x4, offset = 0x4, fixed_abs, tag = 'smem constant byte address 0x4 - core index']
  #allocation1 [shape = 'u32[144,128]{1,0:T(1,128)}', space=vmem, size = 0x12000, scoped, tag = 'internal scratch']
  #allocation2 [shape = 'f32[1,8,32]{2,1,0:T(8,128)}', space=vmem, size = 0x1000, scoped, tag = 'scratch operand']
  #allocation3 [shape = 's32[1]{0}', space=sflag, size = 0x4, scoped, tag = 'scoped memory for tpu_custom_call.1']
  #allocation4 [shape = 'u8[512]{0}', space=smem, size = 0x200, scoped, tag = 'prefetched SMEM operand 0']
  %s0 = inlined_call_operand.vmem [shape: s32[2], index: 0, kind: input, shape index: {}]
  %s1 = inlined_call_operand.vmem [shape: f32[2,8,4], index: 1, kind: input, shape index: {}]
  %s2 = inlined_call_operand.vmem [shape: f32[4,32], index: 2, kind: input, shape index: {}]
  %s3 = inlined_call_operand.vmem [shape: f32[32,32], index: 3, kind: input, shape index: {}]
  %s4 = inlined_call_operand.vmem [shape: f32[32,2], index: 4, kind: input, shape index: {}]
  %s5 = inlined_call_operand.vmem [shape: f32[16,2], index: 5, kind: output, shape index: {}]
  %s6 = sld [smem:[#allocation0]]
  $region49: #{tpu_custom_call.1} parent=0
    _
  %s8 = ssub.s32 1, %s6
  %s9 = scalar_select 0, %s8, %s6
  %s10 = sshll.u32 %s0, 4
  %s11 = int_to_ptr.vmem [resolvable:$true] %s10
  %13 = dma.vmem_to_smem %s11, 16, [#allocation4], [#allocation3]
  %14 = dma.done [#allocation3], 16
  %15 = sfence
  loop: start=0, step=1, limit=4
  $region2: #{tpu_custom_call.1} parent=0 // loop_pre_header
    _
  $region3: #{tpu_custom_call.1} parent=0 // loop_header
    %s17 = sphi 0, %s21
    %p18 = scmp.ge.s32.totalorder %s17, 4
    %s27 = sphi 0, %s29
    %s30 = sphi 0, %s27
    %s31 = sphi 0, %s30
    %s47 = sphi 0, %s31
    %s51 = sphi 0, %s51
    %s53 = sphi 0, %s51
    %s54 = sphi 0, %s53
    %s68 = sphi 0, %s54
    %s72 = sphi 0, %s72
    %s74 = sphi 0, %s72
    %s75 = sphi 0, %s74
    %s89 = sphi 0, %s75
    %s93 = sphi 0, %s93
    %s95 = sphi 0, %s93
    %s96 = sphi 0, %s95
    %s110 = sphi 0, %s96
    %s116 = sphi 0, %s118
    %s119 = sphi 0, %s116
    %s120 = sphi 0, %s119
    %s136 = sphi 0, %s120
  $region4: #{tpu_custom_call.1} parent=0 // loop_header_branch
    %20 = sbr.rel (%p18) target = $region8
  $region5: #{tpu_custom_call.1} parent=0 // loop_body
    %s22 = ssub.s32 %s17, 1
    %s23 = ssub.s32 %s17, 2
    %s24 = sadd.s32 %s17, 1
    %s25 = ssub.s32 %s17, %s24
    %p26 = scmp.eq.s32.totalorder %s25, 0
    %s28 = sadd.s32 %s27, 1
    %s29 = scalar_select %p26, %s27, %s28
    %p32 = pneg %p26
    %p33 = scmp.eq.s32.totalorder %s17, 1
    %p34 = por %p32, %p33
    %p35 = scmp.ne.s32.totalorder %s27, %s30
    %p36 = scmp.eq.s32.totalorder %s17, 0
    %p37 = por %p35, %p36
    %p38 = scmp.ne.s32.totalorder %s27, %s30
    %p39 = scmp.eq.s32.totalorder %s22, 1
    %p40 = por %p38, %p39
    %p41 = scmp.ne.s32.totalorder %s30, %s31
    %p42 = scmp.eq.s32.totalorder %s22, 0
    %p43 = por %p41, %p42
    %p44 = scmp.ne.s32.totalorder %s30, %s31
    %p45 = scmp.eq.s32.totalorder %s23, 1
    %p46 = por %p44, %p45
    %p48 = scmp.ne.s32.totalorder %s31, %s47
    %p49 = scmp.eq.s32.totalorder %s23, 0
    %p50 = por %p48, %p49
    %s52 = sadd.s32 %s51, 1
    %p55 = scmp.eq.s32.totalorder %s17, 1
    %p56 = scmp.ne.s32.totalorder %s51, %s53
    %p57 = scmp.eq.s32.totalorder %s17, 0
    %p58 = por %p56, %p57
    %p59 = scmp.ne.s32.totalorder %s51, %s53
    %p60 = scmp.eq.s32.totalorder %s22, 1
    %p61 = por %p59, %p60
    %p62 = scmp.ne.s32.totalorder %s53, %s54
    %p63 = scmp.eq.s32.totalorder %s22, 0
    %p64 = por %p62, %p63
    %p65 = scmp.ne.s32.totalorder %s53, %s54
    %p66 = scmp.eq.s32.totalorder %s23, 1
    %p67 = por %p65, %p66
    %p69 = scmp.ne.s32.totalorder %s54, %s68
    %p70 = scmp.eq.s32.totalorder %s23, 0
    %p71 = por %p69, %p70
    %s73 = sadd.s32 %s72, 1
    %p76 = scmp.eq.s32.totalorder %s17, 1
    %p77 = scmp.ne.s32.totalorder %s72, %s74
    %p78 = scmp.eq.s32.totalorder %s17, 0
    %p79 = por %p77, %p78
    %p80 = scmp.ne.s32.totalorder %s72, %s74
    %p81 = scmp.eq.s32.totalorder %s22, 1
    %p82 = por %p80, %p81
    %p83 = scmp.ne.s32.totalorder %s74, %s75
    %p84 = scmp.eq.s32.totalorder %s22, 0
    %p85 = por %p83, %p84
    %p86 = scmp.ne.s32.totalorder %s74, %s75
    %p87 = scmp.eq.s32.totalorder %s23, 1
    %p88 = por %p86, %p87
    %p90 = scmp.ne.s32.totalorder %s75, %s89
    %p91 = scmp.eq.s32.totalorder %s23, 0
    %p92 = por %p90, %p91
    %s94 = sadd.s32 %s93, 1
    %p97 = scmp.eq.s32.totalorder %s17, 1
    %p98 = scmp.ne.s32.totalorder %s93, %s95
    %p99 = scmp.eq.s32.totalorder %s17, 0
    %p100 = por %p98, %p99
    %p101 = scmp.ne.s32.totalorder %s93, %s95
    %p102 = scmp.eq.s32.totalorder %s22, 1
    %p103 = por %p101, %p102
    %p104 = scmp.ne.s32.totalorder %s95, %s96
    %p105 = scmp.eq.s32.totalorder %s22, 0
    %p106 = por %p104, %p105
    %p107 = scmp.ne.s32.totalorder %s95, %s96
    %p108 = scmp.eq.s32.totalorder %s23, 1
    %p109 = por %p107, %p108
    %p111 = scmp.ne.s32.totalorder %s96, %s110
    %p112 = scmp.eq.s32.totalorder %s23, 0
    %p113 = por %p111, %p112
    %s114 = ssub.s32 %s17, %s24
    %p115 = scmp.eq.s32.totalorder %s114, 0
    %s117 = sadd.s32 %s116, 1
    %s118 = scalar_select %p115, %s116, %s117
    %p121 = pneg %p115
    %p122 = scmp.eq.s32.totalorder %s17, 1
    %p123 = por %p121, %p122
    %p124 = scmp.ne.s32.totalorder %s116, %s119
    %p125 = scmp.eq.s32.totalorder %s17, 0
    %p126 = por %p124, %p125
    %p127 = scmp.ne.s32.totalorder %s116, %s119
    %p128 = scmp.eq.s32.totalorder %s22, 1
    %p129 = por %p127, %p128
    %p130 = scmp.ne.s32.totalorder %s119, %s120
    %p131 = scmp.eq.s32.totalorder %s22, 0
    %p132 = por %p130, %p131
    %p133 = scmp.ne.s32.totalorder %s119, %s120
    %p134 = scmp.eq.s32.totalorder %s23, 1
    %p135 = por %p133, %p134
    %p137 = scmp.ne.s32.totalorder %s120, %s136
    %p138 = scmp.eq.s32.totalorder %s23, 0
    %p139 = por %p137, %p138
    %p140 = scmp.le.s32.totalorder 1, %s17
    %p141 = scmp.lt.s32.totalorder %s17, 3
    %p142 = pnand %p140, %p141
    %p143 = pneg %p142
    // Predicated region
    $region9: #{tpu_custom_call.1} parent=5 // pred_check
      _
    $region10: #{tpu_custom_call.1} parent=5 // pred_check_branch
      %145 = sbr.rel (%p142) target = $region12
    $region11: #{tpu_custom_call.1} parent=5 // pred_region
      %s146 = ssub.s32 %s17, 1
      // Predicated region
      $region13: #{tpu_custom_call.1} parent=11 // pred_check
        %p147 = pneg %p64
      $region14: #{tpu_custom_call.1} parent=11 // pred_check_branch
        %149 = sbr.rel (%p147) target = $region16
      $region15: #{tpu_custom_call.1} parent=11 // pred_region
        _
      $region16: #{tpu_custom_call.1} parent=11 // pred_fallthru
        _
      // Predicated region
      $region17: #{tpu_custom_call.1} parent=11 // pred_check
        %p150 = pneg %p85
      $region18: #{tpu_custom_call.1} parent=11 // pred_check_branch
        %152 = sbr.rel (%p150) target = $region20
      $region19: #{tpu_custom_call.1} parent=11 // pred_region
        _
      $region20: #{tpu_custom_call.1} parent=11 // pred_fallthru
        _
      // Predicated region
      $region21: #{tpu_custom_call.1} parent=11 // pred_check
        %p153 = pneg %p106
      $region22: #{tpu_custom_call.1} parent=11 // pred_check_branch
        %155 = sbr.rel (%p153) target = $region24
      $region23: #{tpu_custom_call.1} parent=11 // pred_region
        _
      $region24: #{tpu_custom_call.1} parent=11 // pred_fallthru
        _
    $region12: #{tpu_custom_call.1} parent=5 // pred_fallthru
      _
    %p156 = scmp.lt.s32.totalorder %s17, 2
    // Predicated region
    $region25: #{tpu_custom_call.1} parent=5 // pred_check
      %p157 = pneg %p156
    $region26: #{tpu_custom_call.1} parent=5 // pred_check_branch
      %159 = sbr.rel (%p157) target = $region28
    $region27: #{tpu_custom_call.1} parent=5 // pred_region
      // Predicated region
      $region29: #{tpu_custom_call.1} parent=27 // pred_check
        %p160 = pneg %p37
      $region30: #{tpu_custom_call.1} parent=27 // pred_check_branch
        %162 = sbr.rel (%p160) target = $region32
      $region31: #{tpu_custom_call.1} parent=27 // pred_region
        %p163 = scmp.lt.s32.totalorder %s17, 1
        %s164 = scalar_select %p163, %s17, 1
        %s165 = smul.addr %s164, 8
        %s166 = scalar_lea.vmem %s1, %s165
      $region32: #{tpu_custom_call.1} parent=27 // pred_fallthru
        _
    $region28: #{tpu_custom_call.1} parent=5 // pred_fallthru
      _
    %p167 = scmp.le.s32.totalorder 1, %s17
    %p168 = scmp.lt.s32.totalorder %s17, 3
    %p169 = pnand %p167, %p168
    %p170 = pneg %p169
    // Predicated region
    $region33: #{tpu_custom_call.1} parent=5 // pred_check
      _
    $region34: #{tpu_custom_call.1} parent=5 // pred_check_branch
      %172 = sbr.rel (%p169) target = $region36
    $region35: #{tpu_custom_call.1} parent=5 // pred_region
      %s173 = ssub.s32 %s17, 1
      %p174 = scmp.lt.s32.totalorder %s22, 1
      %s175 = scalar_select %p174, %s22, 1
      %s176 = smul.addr %s175, 8
      %s177 = scalar_lea.vmem %s1, %s176
      %p178 = pneg %p43
      %p179 = pneg %p40
      %p180 = pneg %p64
      %p181 = pneg %p61
      %p182 = pneg %p85
      %p183 = pneg %p82
      %p184 = pneg %p106
      %p185 = pneg %p103
      %p186 = pneg %p132
      %p187 = pneg %p129
      %p188 = scmp.lt.s32.totalorder %s22, 1
      %s189 = scalar_select %p188, %s22, 1
      %s190 = smul.addr %s189, 8
      %s191 = scalar_lea.vmem %s5, %s190
      %p192 = scmp.lt.s32.totalorder %s22, 1
      %s193 = scalar_select %p192, %s22, 1
      %s194 = smul.addr %s193, 8
      %s195 = scalar_lea.vmem %s1, %s194
      %p196 = scmp.lt.s32.totalorder %s22, 1
      %s197 = scalar_select %p196, %s22, 1
      %s198 = smul.addr %s197, 8
      %s199 = scalar_lea.vmem %s5, %s198
      %v200 = vlaneseq
      %v201 = vshrl.u32 %v200, 7
      %vm202 = vcmp.eq.s32.totalorder %v201, 0
      %s203 = sld [smem:[#allocation4 + %s22]]
      %v204 = vstv %s203
      %v205 = vsel %vm202, %v204, 0
      %v206 = vld [vmem:[%s195] sm:$0xff]
      %v207 = vld [vmem:[%s2] sm:$0xf]
      %v208 = vld [vmem:[%s3] sm:$0xff]
      %v209 = vld [vmem:[%s3 + $0x8] sm:$0xff]
      %v210 = vld [vmem:[%s3 + $0x10] sm:$0xff]
      %v211 = vld [vmem:[%s3 + $0x18] sm:$0xff]
      %vm212 = vcmask 31744
      %v214 = vsel %vm212, %v206, 0
      %vm216 = vcmask 1043456
      %v218 = vsel %vm216, %v207, 0
      %220 = vmatprep.subr.mxu0 0.0
      %221 = vmatpush1.msra.mxu0 %v218
      %222 = vmatprep.subr.mxu0 0.0
      %223 = vmatpush1.msra.mxu0 0.0
      %224 = vmatprep.subr.mxu0 0.0
      %225 = vmatpush1.msra.mxu0 0.0
      %226 = vmatprep.subr.mxu0 0.0
      %227 = vmatpush1.msra.mxu0 0.0
      %228 = vmatprep.subr.mxu0 0.0
      %229 = vmatpush1.msra.mxu0 0.0
      %230 = vmatprep.subr.mxu0 0.0
      %231 = vmatpush1.msra.mxu0 0.0
      %232 = vmatprep.subr.mxu0 0.0
      %233 = vmatpush1.msra.mxu0 0.0
      %234 = vmatprep.subr.mxu0 0.0
      %235 = vmatpush1.msra.mxu0 0.0
      %236 = vmatprep.subr.mxu0 0.0
      %237 = vmatpush1.msra.mxu0 0.0
      %238 = vmatprep.subr.mxu0 0.0
      %239 = vmatpush1.msra.mxu0 0.0
      %240 = vmatprep.subr.mxu0 0.0
      %241 = vmatpush1.msra.mxu0 0.0
      %242 = vmatprep.subr.mxu0 0.0
      %243 = vmatpush1.msra.mxu0 0.0
      %244 = vmatprep.subr.mxu0 0.0
      %245 = vmatpush1.msra.mxu0 0.0
      %246 = vmatprep.subr.mxu0 0.0
      %247 = vmatpush1.msra.mxu0 0.0
      %248 = vmatprep.subr.mxu0 0.0
      %249 = vmatpush1.msra.mxu0 0.0
      %250 = vmatprep.subr.mxu0 0.0
      %251 = vmatpush1.msra.mxu0 0.0
      %252 = vmatprep.subr.mxu0 0.0
      %253 = vmatpush1.msra.mxu0 0.0
      %254 = vmatprep.subr.mxu0 0.0
      %255 = vmatpush1.msra.mxu0 0.0
      %256 = vmatprep.subr.mxu0 0.0
      %257 = vmatpush1.msra.mxu0 0.0
      %258 = vmatprep.subr.mxu0 0.0
      %259 = vmatpush1.msra.mxu0 0.0
      %260 = vmatprep.subr.mxu0 0.0
      %261 = vmatpush1.msra.mxu0 0.0
      %262 = vmatprep.subr.mxu0 0.0
      %263 = vmatpush1.msra.mxu0 0.0
      %264 = vmatprep.subr.mxu0 0.0
      %265 = vmatpush1.msra.mxu0 0.0
      %266 = vmatprep.subr.mxu0 0.0
      %267 = vmatpush1.msra.mxu0 0.0
      %268 = vmatprep.subr.mxu0 0.0
      %269 = vmatpush1.msra.mxu0 0.0
      %270 = vmatprep.subr.mxu0 0.0
      %271 = vmatpush1.msra.mxu0 0.0
      %272 = vmatprep.subr.mxu0 0.0
      %273 = vmatpush1.msra.mxu0 0.0
      %274 = vmatprep.subr.mxu0 0.0
      %275 = vmatpush1.msra.mxu0 0.0
      %276 = vmatprep.subr.mxu0 0.0
      %277 = vmatpush1.msra.mxu0 0.0
      %278 = vmatprep.subr.mxu0 0.0
      %279 = vmatpush1.msra.mxu0 0.0
      %280 = vmatprep.subr.mxu0 0.0
      %281 = vmatpush1.msra.mxu0 0.0
      %282 = vmatprep.subr.mxu0 0.0
      %283 = vmatpush1.msra.mxu0 0.0
      %284 = vmatprep.mubr.f32.mxu0 0.0
      %285 = vmatmul.mubr.f32.gmra.mrb[0].mxu0 %v214
      %v286 = vpop.f32.mrb[0].mxu0
      %v287 = vadd.f32 0.0, %v286
      %v288 = vpop.f32.mrb[0].mxu0
      %289 = vdwg.mxu0
      %vm290 = vcmask 261120
      %v292 = vsel %vm290, 0.0, 0
      %294 = vmatprep.subr.mxu0 0.0
      %295 = vmatpush1.msra.mxu0 %v208
      %296 = vmatprep.subr.mxu0 0.0
      %297 = vmatpush1.msra.mxu0 %v209
      %298 = vmatprep.subr.mxu0 0.0
      %299 = vmatpush1.msra.mxu0 %v210
      %300 = vmatprep.subr.mxu0 0.0
      %301 = vmatpush1.msra.mxu0 %v211
      %302 = vmatprep.subr.mxu0 0.0
      %303 = vmatpush1.msra.mxu0 0.0
      %304 = vmatprep.subr.mxu0 0.0
      %305 = vmatpush1.msra.mxu0 0.0
      %306 = vmatprep.subr.mxu0 0.0
      %307 = vmatpush1.msra.mxu0 0.0
      %308 = vmatprep.subr.mxu0 0.0
      %309 = vmatpush1.msra.mxu0 0.0
      %310 = vmatprep.subr.mxu0 0.0
      %311 = vmatpush1.msra.mxu0 0.0
      %312 = vmatprep.subr.mxu0 0.0
      %313 = vmatpush1.msra.mxu0 0.0
      %314 = vmatprep.subr.mxu0 0.0
      %315 = vmatpush1.msra.mxu0 0.0
      %316 = vmatprep.subr.mxu0 0.0
      %317 = vmatpush1.msra.mxu0 0.0
      %318 = vmatprep.subr.mxu0 0.0
      %319 = vmatpush1.msra.mxu0 0.0
      %320 = vmatprep.subr.mxu0 0.0
      %321 = vmatpush1.msra.mxu0 0.0
      %322 = vmatprep.subr.mxu0 0.0
      %323 = vmatpush1.msra.mxu0 0.0
      %324 = vmatprep.subr.mxu0 0.0
      %325 = vmatpush1.msra.mxu0 0.0
      %326 = vmatprep.subr.mxu0 0.0
      %327 = vmatpush1.msra.mxu0 0.0
      %328 = vmatprep.subr.mxu0 0.0
      %329 = vmatpush1.msra.mxu0 0.0
      %330 = vmatprep.subr.mxu0 0.0
      %331 = vmatpush1.msra.mxu0 0.0
      %332 = vmatprep.subr.mxu0 0.0
      %333 = vmatpush1.msra.mxu0 0.0
      %334 = vmatprep.subr.mxu0 0.0
      %335 = vmatpush1.msra.mxu0 0.0
      %336 = vmatprep.subr.mxu0 0.0
      %337 = vmatpush1.msra.mxu0 0.0
      %338 = vmatprep.subr.mxu0 0.0
      %339 = vmatpush1.msra.mxu0 0.0
      %340 = vmatprep.subr.mxu0 0.0
      %341 = vmatpush1.msra.mxu0 0.0
      %342 = vmatprep.subr.mxu0 0.0
      %343 = vmatpush1.msra.mxu0 0.0
      %344 = vmatprep.subr.mxu0 0.0
      %345 = vmatpush1.msra.mxu0 0.0
      %346 = vmatprep.subr.mxu0 0.0
      %347 = vmatpush1.msra.mxu0 0.0
      %348 = vmatprep.subr.mxu0 0.0
      %349 = vmatpush1.msra.mxu0 0.0
      %350 = vmatprep.subr.mxu0 0.0
      %351 = vmatpush1.msra.mxu0 0.0
      %352 = vmatprep.subr.mxu0 0.0
      %353 = vmatpush1.msra.mxu0 0.0
      %354 = vmatprep.subr.mxu0 0.0
      %355 = vmatpush1.msra.mxu0 0.0
      %356 = vmatprep.subr.mxu0 0.0
      %357 = vmatpush1.msra.mxu0 0.0
      %358 = vmatprep.mubr.f32.mxu0 0.0
      %359 = vmatmul.mubr.f32.gmra.mrb[0].mxu0 %v292
      %v360 = vpop.f32.mrb[0].mxu0
      %v361 = vadd.f32 0.0, %v360
      %v362 = vpop.f32.mrb[0].mxu0
      %363 = vdwg.mxu0
      %v364 = vadd.f32 %v287, %v361
      %v365 = vmax.f32 %v364, 0.0
      %vm366 = vcmp.gt.s32.totalorder %v205, 0
      %v367 = vsel %vm366, 1, 0
      %vm368 = vcmp.eq.s32.totalorder %v367, 1
      %v369 = vsel %vm368, %v365, 0.0
      %vm370 = vcmask 253952
      %371 = vst.msk [vmem:[#allocation2] sm:$0x1] %vm370, %v369
      %v373 = vsel %vm290, %v369, 0
      %375 = vmatprep.subr.mxu0 0.0
      %376 = vmatpush1.msra.mxu0 %v208
      %377 = vmatprep.subr.mxu0 0.0
      %378 = vmatpush1.msra.mxu0 %v209
      %379 = vmatprep.subr.mxu0 0.0
      %380 = vmatpush1.msra.mxu0 %v210
      %381 = vmatprep.subr.mxu0 0.0
      %382 = vmatpush1.msra.mxu0 %v211
      %383 = vmatprep.subr.mxu0 0.0
      %384 = vmatpush1.msra.mxu0 0.0
      %385 = vmatprep.subr.mxu0 0.0
      %386 = vmatpush1.msra.mxu0 0.0
      %387 = vmatprep.subr.mxu0 0.0
      %388 = vmatpush1.msra.mxu0 0.0
      %389 = vmatprep.subr.mxu0 0.0
      %390 = vmatpush1.msra.mxu0 0.0
      %391 = vmatprep.subr.mxu0 0.0
      %392 = vmatpush1.msra.mxu0 0.0
      %393 = vmatprep.subr.mxu0 0.0
      %394 = vmatpush1.msra.mxu0 0.0
      %395 = vmatprep.subr.mxu0 0.0
      %396 = vmatpush1.msra.mxu0 0.0
      %397 = vmatprep.subr.mxu0 0.0
      %398 = vmatpush1.msra.mxu0 0.0
      %399 = vmatprep.subr.mxu0 0.0
      %400 = vmatpush1.msra.mxu0 0.0
      %401 = vmatprep.subr.mxu0 0.0
      %402 = vmatpush1.msra.mxu0 0.0
      %403 = vmatprep.subr.mxu0 0.0
      %404 = vmatpush1.msra.mxu0 0.0
      %405 = vmatprep.subr.mxu0 0.0
      %406 = vmatpush1.msra.mxu0 0.0
      %407 = vmatprep.subr.mxu0 0.0
      %408 = vmatpush1.msra.mxu0 0.0
      %409 = vmatprep.subr.mxu0 0.0
      %410 = vmatpush1.msra.mxu0 0.0
      %411 = vmatprep.subr.mxu0 0.0
      %412 = vmatpush1.msra.mxu0 0.0
      %413 = vmatprep.subr.mxu0 0.0
      %414 = vmatpush1.msra.mxu0 0.0
      %415 = vmatprep.subr.mxu0 0.0
      %416 = vmatpush1.msra.mxu0 0.0
      %417 = vmatprep.subr.mxu0 0.0
      %418 = vmatpush1.msra.mxu0 0.0
      %419 = vmatprep.subr.mxu0 0.0
      %420 = vmatpush1.msra.mxu0 0.0
      %421 = vmatprep.subr.mxu0 0.0
      %422 = vmatpush1.msra.mxu0 0.0
      %423 = vmatprep.subr.mxu0 0.0
      %424 = vmatpush1.msra.mxu0 0.0
      %425 = vmatprep.subr.mxu0 0.0
      %426 = vmatpush1.msra.mxu0 0.0
      %427 = vmatprep.subr.mxu0 0.0
      %428 = vmatpush1.msra.mxu0 0.0
      %429 = vmatprep.subr.mxu0 0.0
      %430 = vmatpush1.msra.mxu0 0.0
      %431 = vmatprep.subr.mxu0 0.0
      %432 = vmatpush1.msra.mxu0 0.0
      %433 = vmatprep.subr.mxu0 0.0
      %434 = vmatpush1.msra.mxu0 0.0
      %435 = vmatprep.subr.mxu0 0.0
      %436 = vmatpush1.msra.mxu0 0.0
      %437 = vmatprep.subr.mxu0 0.0
      %438 = vmatpush1.msra.mxu0 0.0
      %439 = vmatprep.mubr.f32.mxu0 0.0
      %440 = vmatmul.mubr.f32.gmra.mrb[0].mxu0 %v373
      %v441 = vpop.f32.mrb[0].mxu0
      %v442 = vadd.f32 0.0, %v441
      %v443 = vpop.f32.mrb[0].mxu0
      %444 = vdwg.mxu0
      %v446 = vrot.slane %v442, 7
      %v448 = vadd.f32 %v287, %v446
      %v449 = vmax.f32 %v448, 0.0
      %vm450 = vcmp.gt.s32.totalorder %v205, 1
      %v451 = vsel %vm450, 1, 0
      %vm452 = vcmp.eq.s32.totalorder %v451, 1
      %v454 = vrot.slane %v449, 1
      %v456 = vsel %vm452, %v454, %v369
      %v457 = vsel %vm452, %v454, 0.0
      %458 = vst.msk [vmem:[#allocation2 + $0x1] sm:$0x1] %vm370, %v457
      %v460 = vsel %vm290, %v456, 0
      %462 = vmatprep.subr.mxu0 0.0
      %463 = vmatpush1.msra.mxu0 %v208
      %464 = vmatprep.subr.mxu0 0.0
      %465 = vmatpush1.msra.mxu0 %v209
      %466 = vmatprep.subr.mxu0 0.0
      %467 = vmatpush1.msra.mxu0 %v210
      %468 = vmatprep.subr.mxu0 0.0
      %469 = vmatpush1.msra.mxu0 %v211
      %470 = vmatprep.subr.mxu0 0.0
      %471 = vmatpush1.msra.mxu0 0.0
      %472 = vmatprep.subr.mxu0 0.0
      %473 = vmatpush1.msra.mxu0 0.0
      %474 = vmatprep.subr.mxu0 0.0
      %475 = vmatpush1.msra.mxu0 0.0
      %476 = vmatprep.subr.mxu0 0.0
      %477 = vmatpush1.msra.mxu0 0.0
      %478 = vmatprep.subr.mxu0 0.0
      %479 = vmatpush1.msra.mxu0 0.0
      %480 = vmatprep.subr.mxu0 0.0
      %481 = vmatpush1.msra.mxu0 0.0
      %482 = vmatprep.subr.mxu0 0.0
      %483 = vmatpush1.msra.mxu0 0.0
      %484 = vmatprep.subr.mxu0 0.0
      %485 = vmatpush1.msra.mxu0 0.0
      %486 = vmatprep.subr.mxu0 0.0
      %487 = vmatpush1.msra.mxu0 0.0
      %488 = vmatprep.subr.mxu0 0.0
      %489 = vmatpush1.msra.mxu0 0.0
      %490 = vmatprep.subr.mxu0 0.0
      %491 = vmatpush1.msra.mxu0 0.0
      %492 = vmatprep.subr.mxu0 0.0
      %493 = vmatpush1.msra.mxu0 0.0
      %494 = vmatprep.subr.mxu0 0.0
      %495 = vmatpush1.msra.mxu0 0.0
      %496 = vmatprep.subr.mxu0 0.0
      %497 = vmatpush1.msra.mxu0 0.0
      %498 = vmatprep.subr.mxu0 0.0
      %499 = vmatpush1.msra.mxu0 0.0
      %500 = vmatprep.subr.mxu0 0.0
      %501 = vmatpush1.msra.mxu0 0.0
      %502 = vmatprep.subr.mxu0 0.0
      %503 = vmatpush1.msra.mxu0 0.0
      %504 = vmatprep.subr.mxu0 0.0
      %505 = vmatpush1.msra.mxu0 0.0
      %506 = vmatprep.subr.mxu0 0.0
      %507 = vmatpush1.msra.mxu0 0.0
      %508 = vmatprep.subr.mxu0 0.0
      %509 = vmatpush1.msra.mxu0 0.0
      %510 = vmatprep.subr.mxu0 0.0
      %511 = vmatpush1.msra.mxu0 0.0
      %512 = vmatprep.subr.mxu0 0.0
      %513 = vmatpush1.msra.mxu0 0.0
      %514 = vmatprep.subr.mxu0 0.0
      %515 = vmatpush1.msra.mxu0 0.0
      %516 = vmatprep.subr.mxu0 0.0
      %517 = vmatpush1.msra.mxu0 0.0
      %518 = vmatprep.subr.mxu0 0.0
      %519 = vmatpush1.msra.mxu0 0.0
      %520 = vmatprep.subr.mxu0 0.0
      %521 = vmatpush1.msra.mxu0 0.0
      %522 = vmatprep.subr.mxu0 0.0
      %523 = vmatpush1.msra.mxu0 0.0
      %524 = vmatprep.subr.mxu0 0.0
      %525 = vmatpush1.msra.mxu0 0.0
      %526 = vmatprep.mubr.f32.mxu0 0.0
      %527 = vmatmul.mubr.f32.gmra.mrb[0].mxu0 %v460
      %v528 = vpop.f32.mrb[0].mxu0
      %v529 = vadd.f32 0.0, %v528
      %v530 = vpop.f32.mrb[0].mxu0
      %531 = vdwg.mxu0
      %v533 = vrot.slane %v529, 6
      %v535 = vadd.f32 %v287, %v533
      %v536 = vmax.f32 %v535, 0.0
      %vm537 = vcmp.gt.s32.totalorder %v205, 2
      %v538 = vsel %vm537, 1, 0
      %vm539 = vcmp.eq.s32.totalorder %v538, 1
      %v541 = vrot.slane %v536, 2
      %v543 = vsel %vm539, %v541, %v456
      %v544 = vsel %vm539, %v541, 0.0
      %545 = vst.msk [vmem:[#allocation2 + $0x2] sm:$0x1] %vm370, %v544
      %v547 = vsel %vm290, %v543, 0
      %549 = vmatprep.subr.mxu0 0.0
      %550 = vmatpush1.msra.mxu0 %v208
      %551 = vmatprep.subr.mxu0 0.0
      %552 = vmatpush1.msra.mxu0 %v209
      %553 = vmatprep.subr.mxu0 0.0
      %554 = vmatpush1.msra.mxu0 %v210
      %555 = vmatprep.subr.mxu0 0.0
      %556 = vmatpush1.msra.mxu0 %v211
      %557 = vmatprep.subr.mxu0 0.0
      %558 = vmatpush1.msra.mxu0 0.0
      %559 = vmatprep.subr.mxu0 0.0
      %560 = vmatpush1.msra.mxu0 0.0
      %561 = vmatprep.subr.mxu0 0.0
      %562 = vmatpush1.msra.mxu0 0.0
      %563 = vmatprep.subr.mxu0 0.0
      %564 = vmatpush1.msra.mxu0 0.0
      %565 = vmatprep.subr.mxu0 0.0
      %566 = vmatpush1.msra.mxu0 0.0
      %567 = vmatprep.subr.mxu0 0.0
      %568 = vmatpush1.msra.mxu0 0.0
      %569 = vmatprep.subr.mxu0 0.0
      %570 = vmatpush1.msra.mxu0 0.0
      %571 = vmatprep.subr.mxu0 0.0
      %572 = vmatpush1.msra.mxu0 0.0
      %573 = vmatprep.subr.mxu0 0.0
      %574 = vmatpush1.msra.mxu0 0.0
      %575 = vmatprep.subr.mxu0 0.0
      %576 = vmatpush1.msra.mxu0 0.0
      %577 = vmatprep.subr.mxu0 0.0
      %578 = vmatpush1.msra.mxu0 0.0
      %579 = vmatprep.subr.mxu0 0.0
      %580 = vmatpush1.msra.mxu0 0.0
      %581 = vmatprep.subr.mxu0 0.0
      %582 = vmatpush1.msra.mxu0 0.0
      %583 = vmatprep.subr.mxu0 0.0
      %584 = vmatpush1.msra.mxu0 0.0
      %585 = vmatprep.subr.mxu0 0.0
      %586 = vmatpush1.msra.mxu0 0.0
      %587 = vmatprep.subr.mxu0 0.0
      %588 = vmatpush1.msra.mxu0 0.0
      %589 = vmatprep.subr.mxu0 0.0
      %590 = vmatpush1.msra.mxu0 0.0
      %591 = vmatprep.subr.mxu0 0.0
      %592 = vmatpush1.msra.mxu0 0.0
      %593 = vmatprep.subr.mxu0 0.0
      %594 = vmatpush1.msra.mxu0 0.0
      %595 = vmatprep.subr.mxu0 0.0
      %596 = vmatpush1.msra.mxu0 0.0
      %597 = vmatprep.subr.mxu0 0.0
      %598 = vmatpush1.msra.mxu0 0.0
      %599 = vmatprep.subr.mxu0 0.0
      %600 = vmatpush1.msra.mxu0 0.0
      %601 = vmatprep.subr.mxu0 0.0
      %602 = vmatpush1.msra.mxu0 0.0
      %603 = vmatprep.subr.mxu0 0.0
      %604 = vmatpush1.msra.mxu0 0.0
      %605 = vmatprep.subr.mxu0 0.0
      %606 = vmatpush1.msra.mxu0 0.0
      %607 = vmatprep.subr.mxu0 0.0
      %608 = vmatpush1.msra.mxu0 0.0
      %609 = vmatprep.subr.mxu0 0.0
      %610 = vmatpush1.msra.mxu0 0.0
      %611 = vmatprep.subr.mxu0 0.0
      %612 = vmatpush1.msra.mxu0 0.0
      %613 = vmatprep.mubr.f32.mxu0 0.0
      %614 = vmatmul.mubr.f32.gmra.mrb[0].mxu0 %v547
      %v615 = vpop.f32.mrb[0].mxu0
      %v616 = vadd.f32 0.0, %v615
      %v617 = vpop.f32.mrb[0].mxu0
      %618 = vdwg.mxu0
      %v620 = vrot.slane %v616, 5
      %v622 = vadd.f32 %v287, %v620
      %v623 = vmax.f32 %v622, 0.0
      %vm624 = vcmp.gt.s32.totalorder %v205, 3
      %v625 = vsel %vm624, 1, 0
      %vm626 = vcmp.eq.s32.totalorder %v625, 1
      %v628 = vrot.slane %v623, 3
      %v630 = vsel %vm626, %v628, %v543
      %v631 = vsel %vm626, %v628, 0.0
      %632 = vst.msk [vmem:[#allocation2 + $0x3] sm:$0x1] %vm370, %v631
      %v634 = vsel %vm290, %v630, 0
      %636 = vmatprep.subr.mxu0 0.0
      %637 = vmatpush1.msra.mxu0 %v208
      %638 = vmatprep.subr.mxu0 0.0
      %639 = vmatpush1.msra.mxu0 %v209
      %640 = vmatprep.subr.mxu0 0.0
      %641 = vmatpush1.msra.mxu0 %v210
      %642 = vmatprep.subr.mxu0 0.0
      %643 = vmatpush1.msra.mxu0 %v211
      %644 = vmatprep.subr.mxu0 0.0
      %645 = vmatpush1.msra.mxu0 0.0
      %646 = vmatprep.subr.mxu0 0.0
      %647 = vmatpush1.msra.mxu0 0.0
      %648 = vmatprep.subr.mxu0 0.0
      %649 = vmatpush1.msra.mxu0 0.0
      %650 = vmatprep.subr.mxu0 0.0
      %651 = vmatpush1.msra.mxu0 0.0
      %652 = vmatprep.subr.mxu0 0.0
      %653 = vmatpush1.msra.mxu0 0.0
      %654 = vmatprep.subr.mxu0 0.0
      %655 = vmatpush1.msra.mxu0 0.0
      %656 = vmatprep.subr.mxu0 0.0
      %657 = vmatpush1.msra.mxu0 0.0
      %658 = vmatprep.subr.mxu0 0.0
      %659 = vmatpush1.msra.mxu0 0.0
      %660 = vmatprep.subr.mxu0 0.0
      %661 = vmatpush1.msra.mxu0 0.0
      %662 = vmatprep.subr.mxu0 0.0
      %663 = vmatpush1.msra.mxu0 0.0
      %664 = vmatprep.subr.mxu0 0.0
      %665 = vmatpush1.msra.mxu0 0.0
      %666 = vmatprep.subr.mxu0 0.0
      %667 = vmatpush1.msra.mxu0 0.0
      %668 = vmatprep.subr.mxu0 0.0
      %669 = vmatpush1.msra.mxu0 0.0
      %670 = vmatprep.subr.mxu0 0.0
      %671 = vmatpush1.msra.mxu0 0.0
      %672 = vmatprep.subr.mxu0 0.0
      %673 = vmatpush1.msra.mxu0 0.0
      %674 = vmatprep.subr.mxu0 0.0
      %675 = vmatpush1.msra.mxu0 0.0
      %676 = vmatprep.subr.mxu0 0.0
      %677 = vmatpush1.msra.mxu0 0.0
      %678 = vmatprep.subr.mxu0 0.0
      %679 = vmatpush1.msra.mxu0 0.0
      %680 = vmatprep.subr.mxu0 0.0
      %681 = vmatpush1.msra.mxu0 0.0
      %682 = vmatprep.subr.mxu0 0.0
      %683 = vmatpush1.msra.mxu0 0.0
      %684 = vmatprep.subr.mxu0 0.0
      %685 = vmatpush1.msra.mxu0 0.0
      %686 = vmatprep.subr.mxu0 0.0
      %687 = vmatpush1.msra.mxu0 0.0
      %688 = vmatprep.subr.mxu0 0.0
      %689 = vmatpush1.msra.mxu0 0.0
      %690 = vmatprep.subr.mxu0 0.0
      %691 = vmatpush1.msra.mxu0 0.0
      %692 = vmatprep.subr.mxu0 0.0
      %693 = vmatpush1.msra.mxu0 0.0
      %694 = vmatprep.subr.mxu0 0.0
      %695 = vmatpush1.msra.mxu0 0.0
      %696 = vmatprep.subr.mxu0 0.0
      %697 = vmatpush1.msra.mxu0 0.0
      %698 = vmatprep.subr.mxu0 0.0
      %699 = vmatpush1.msra.mxu0 0.0
      %700 = vmatprep.mubr.f32.mxu0 0.0
      %701 = vmatmul.mubr.f32.gmra.mrb[0].mxu0 %v634
      %v702 = vpop.f32.mrb[0].mxu0
      %v703 = vadd.f32 0.0, %v702
      %v704 = vpop.f32.mrb[0].mxu0
      %705 = vdwg.mxu0
      %v707 = vrot.slane %v703, 4
      %v709 = vadd.f32 %v287, %v707
      %v710 = vmax.f32 %v709, 0.0
      %vm711 = vcmp.gt.s32.totalorder %v205, 4
      %v712 = vsel %vm711, 1, 0
      %vm713 = vcmp.eq.s32.totalorder %v712, 1
      %v715 = vrot.slane %v710, 4
      %v717 = vsel %vm713, %v715, %v630
      %v718 = vsel %vm713, %v715, 0.0
      %719 = vst.msk [vmem:[#allocation2 + $0x4] sm:$0x1] %vm370, %v718
      %v721 = vsel %vm290, %v717, 0
      %723 = vmatprep.subr.mxu0 0.0
      %724 = vmatpush1.msra.mxu0 %v208
      %725 = vmatprep.subr.mxu0 0.0
      %726 = vmatpush1.msra.mxu0 %v209
      %727 = vmatprep.subr.mxu0 0.0
      %728 = vmatpush1.msra.mxu0 %v210
      %729 = vmatprep.subr.mxu0 0.0
      %730 = vmatpush1.msra.mxu0 %v211
      %731 = vmatprep.subr.mxu0 0.0
      %732 = vmatpush1.msra.mxu0 0.0
      %733 = vmatprep.subr.mxu0 0.0
      %734 = vmatpush1.msra.mxu0 0.0
      %735 = vmatprep.subr.mxu0 0.0
      %736 = vmatpush1.msra.mxu0 0.0
      %737 = vmatprep.subr.mxu0 0.0
      %738 = vmatpush1.msra.mxu0 0.0
      %739 = vmatprep.subr.mxu0 0.0
      %740 = vmatpush1.msra.mxu0 0.0
      %741 = vmatprep.subr.mxu0 0.0
      %742 = vmatpush1.msra.mxu0 0.0
      %743 = vmatprep.subr.mxu0 0.0
      %744 = vmatpush1.msra.mxu0 0.0
      %745 = vmatprep.subr.mxu0 0.0
      %746 = vmatpush1.msra.mxu0 0.0
      %747 = vmatprep.subr.mxu0 0.0
      %748 = vmatpush1.msra.mxu0 0.0
      %749 = vmatprep.subr.mxu0 0.0
      %750 = vmatpush1.msra.mxu0 0.0
      %751 = vmatprep.subr.mxu0 0.0
      %752 = vmatpush1.msra.mxu0 0.0
      %753 = vmatprep.subr.mxu0 0.0
      %754 = vmatpush1.msra.mxu0 0.0
      %755 = vmatprep.subr.mxu0 0.0
      %756 = vmatpush1.msra.mxu0 0.0
      %757 = vmatprep.subr.mxu0 0.0
      %758 = vmatpush1.msra.mxu0 0.0
      %759 = vmatprep.subr.mxu0 0.0
      %760 = vmatpush1.msra.mxu0 0.0
      %761 = vmatprep.subr.mxu0 0.0
      %762 = vmatpush1.msra.mxu0 0.0
      %763 = vmatprep.subr.mxu0 0.0
      %764 = vmatpush1.msra.mxu0 0.0
      %765 = vmatprep.subr.mxu0 0.0
      %766 = vmatpush1.msra.mxu0 0.0
      %767 = vmatprep.subr.mxu0 0.0
      %768 = vmatpush1.msra.mxu0 0.0
      %769 = vmatprep.subr.mxu0 0.0
      %770 = vmatpush1.msra.mxu0 0.0
      %771 = vmatprep.subr.mxu0 0.0
      %772 = vmatpush1.msra.mxu0 0.0
      %773 = vmatprep.subr.mxu0 0.0
      %774 = vmatpush1.msra.mxu0 0.0
      %775 = vmatprep.subr.mxu0 0.0
      %776 = vmatpush1.msra.mxu0 0.0
      %777 = vmatprep.subr.mxu0 0.0
      %778 = vmatpush1.msra.mxu0 0.0
      %779 = vmatprep.subr.mxu0 0.0
      %780 = vmatpush1.msra.mxu0 0.0
      %781 = vmatprep.subr.mxu0 0.0
      %782 = vmatpush1.msra.mxu0 0.0
      %783 = vmatprep.subr.mxu0 0.0
      %784 = vmatpush1.msra.mxu0 0.0
      %785 = vmatprep.subr.mxu0 0.0
      %786 = vmatpush1.msra.mxu0 0.0
      %787 = vmatprep.mubr.f32.mxu0 0.0
      %788 = vmatmul.mubr.f32.gmra.mrb[0].mxu0 %v721
      %v789 = vpop.f32.mrb[0].mxu0
      %v790 = vadd.f32 0.0, %v789
      %v791 = vpop.f32.mrb[0].mxu0
      %792 = vdwg.mxu0
      %v794 = vrot.slane %v790, 3
      %v796 = vadd.f32 %v287, %v794
      %v797 = vmax.f32 %v796, 0.0
      %vm798 = vcmp.gt.s32.totalorder %v205, 5
      %v799 = vsel %vm798, 1, 0
      %vm800 = vcmp.eq.s32.totalorder %v799, 1
      %v802 = vrot.slane %v797, 5
      %v804 = vsel %vm800, %v802, %v717
      %v805 = vsel %vm800, %v802, 0.0
      %806 = vst.msk [vmem:[#allocation2 + $0x5] sm:$0x1] %vm370, %v805
      %v808 = vsel %vm290, %v804, 0
      %810 = vmatprep.subr.mxu0 0.0
      %811 = vmatpush1.msra.mxu0 %v208
      %812 = vmatprep.subr.mxu0 0.0
      %813 = vmatpush1.msra.mxu0 %v209
      %814 = vmatprep.subr.mxu0 0.0
      %815 = vmatpush1.msra.mxu0 %v210
      %816 = vmatprep.subr.mxu0 0.0
      %817 = vmatpush1.msra.mxu0 %v211
      %818 = vmatprep.subr.mxu0 0.0
      %819 = vmatpush1.msra.mxu0 0.0
      %820 = vmatprep.subr.mxu0 0.0
      %821 = vmatpush1.msra.mxu0 0.0
      %822 = vmatprep.subr.mxu0 0.0
      %823 = vmatpush1.msra.mxu0 0.0
      %824 = vmatprep.subr.mxu0 0.0
      %825 = vmatpush1.msra.mxu0 0.0
      %826 = vmatprep.subr.mxu0 0.0
      %827 = vmatpush1.msra.mxu0 0.0
      %828 = vmatprep.subr.mxu0 0.0
      %829 = vmatpush1.msra.mxu0 0.0
      %830 = vmatprep.subr.mxu0 0.0
      %831 = vmatpush1.msra.mxu0 0.0
      %832 = vmatprep.subr.mxu0 0.0
      %833 = vmatpush1.msra.mxu0 0.0
      %834 = vmatprep.subr.mxu0 0.0
      %835 = vmatpush1.msra.mxu0 0.0
      %836 = vmatprep.subr.mxu0 0.0
      %837 = vmatpush1.msra.mxu0 0.0
      %838 = vmatprep.subr.mxu0 0.0
      %839 = vmatpush1.msra.mxu0 0.0
      %840 = vmatprep.subr.mxu0 0.0
      %841 = vmatpush1.msra.mxu0 0.0
      %842 = vmatprep.subr.mxu0 0.0
      %843 = vmatpush1.msra.mxu0 0.0
      %844 = vmatprep.subr.mxu0 0.0
      %845 = vmatpush1.msra.mxu0 0.0
      %846 = vmatprep.subr.mxu0 0.0
      %847 = vmatpush1.msra.mxu0 0.0
      %848 = vmatprep.subr.mxu0 0.0
      %849 = vmatpush1.msra.mxu0 0.0
      %850 = vmatprep.subr.mxu0 0.0
      %851 = vmatpush1.msra.mxu0 0.0
      %852 = vmatprep.subr.mxu0 0.0
      %853 = vmatpush1.msra.mxu0 0.0
      %854 = vmatprep.subr.mxu0 0.0
      %855 = vmatpush1.msra.mxu0 0.0
      %856 = vmatprep.subr.mxu0 0.0
      %857 = vmatpush1.msra.mxu0 0.0
      %858 = vmatprep.subr.mxu0 0.0
      %859 = vmatpush1.msra.mxu0 0.0
      %860 = vmatprep.subr.mxu0 0.0
      %861 = vmatpush1.msra.mxu0 0.0
      %862 = vmatprep.subr.mxu0 0.0
      %863 = vmatpush1.msra.mxu0 0.0
      %864 = vmatprep.subr.mxu0 0.0
      %865 = vmatpush1.msra.mxu0 0.0
      %866 = vmatprep.subr.mxu0 0.0
      %867 = vmatpush1.msra.mxu0 0.0
      %868 = vmatprep.subr.mxu0 0.0
      %869 = vmatpush1.msra.mxu0 0.0
      %870 = vmatprep.subr.mxu0 0.0
      %871 = vmatpush1.msra.mxu0 0.0
      %872 = vmatprep.subr.mxu0 0.0
      %873 = vmatpush1.msra.mxu0 0.0
      %874 = vmatprep.mubr.f32.mxu0 0.0
      %875 = vmatmul.mubr.f32.gmra.mrb[0].mxu0 %v808
      %v876 = vpop.f32.mrb[0].mxu0
      %v877 = vadd.f32 0.0, %v876
      %v878 = vpop.f32.mrb[0].mxu0
      %879 = vdwg.mxu0
      %v881 = vrot.slane %v877, 2
      %v883 = vadd.f32 %v287, %v881
      %v884 = vmax.f32 %v883, 0.0
      %vm885 = vcmp.gt.s32.totalorder %v205, 6
      %v886 = vsel %vm885, 1, 0
      %vm887 = vcmp.eq.s32.totalorder %v886, 1
      %v889 = vrot.slane %v884, 6
      %v891 = vsel %vm887, %v889, %v804
      %v892 = vsel %vm887, %v889, 0.0
      %893 = vst.msk [vmem:[#allocation2 + $0x6] sm:$0x1] %vm370, %v892
      %v895 = vsel %vm290, %v891, 0
      %897 = vmatprep.subr.mxu0 0.0
      %898 = vmatpush1.msra.mxu0 %v208
      %899 = vmatprep.subr.mxu0 0.0
      %900 = vmatpush1.msra.mxu0 %v209
      %901 = vmatprep.subr.mxu0 0.0
      %902 = vmatpush1.msra.mxu0 %v210
      %903 = vmatprep.subr.mxu0 0.0
      %904 = vmatpush1.msra.mxu0 %v211
      %905 = vmatprep.subr.mxu0 0.0
      %906 = vmatpush1.msra.mxu0 0.0
      %907 = vmatprep.subr.mxu0 0.0
      %908 = vmatpush1.msra.mxu0 0.0
      %909 = vmatprep.subr.mxu0 0.0
      %910 = vmatpush1.msra.mxu0 0.0
      %911 = vmatprep.subr.mxu0 0.0
      %912 = vmatpush1.msra.mxu0 0.0
      %913 = vmatprep.subr.mxu0 0.0
      %914 = vmatpush1.msra.mxu0 0.0
      %915 = vmatprep.subr.mxu0 0.0
      %916 = vmatpush1.msra.mxu0 0.0
      %917 = vmatprep.subr.mxu0 0.0
      %918 = vmatpush1.msra.mxu0 0.0
      %919 = vmatprep.subr.mxu0 0.0
      %920 = vmatpush1.msra.mxu0 0.0
      %921 = vmatprep.subr.mxu0 0.0
      %922 = vmatpush1.msra.mxu0 0.0
      %923 = vmatprep.subr.mxu0 0.0
      %924 = vmatpush1.msra.mxu0 0.0
      %925 = vmatprep.subr.mxu0 0.0
      %926 = vmatpush1.msra.mxu0 0.0
      %927 = vmatprep.subr.mxu0 0.0
      %928 = vmatpush1.msra.mxu0 0.0
      %929 = vmatprep.subr.mxu0 0.0
      %930 = vmatpush1.msra.mxu0 0.0
      %931 = vmatprep.subr.mxu0 0.0
      %932 = vmatpush1.msra.mxu0 0.0
      %933 = vmatprep.subr.mxu0 0.0
      %934 = vmatpush1.msra.mxu0 0.0
      %935 = vmatprep.subr.mxu0 0.0
      %936 = vmatpush1.msra.mxu0 0.0
      %937 = vmatprep.subr.mxu0 0.0
      %938 = vmatpush1.msra.mxu0 0.0
      %939 = vmatprep.subr.mxu0 0.0
      %940 = vmatpush1.msra.mxu0 0.0
      %941 = vmatprep.subr.mxu0 0.0
      %942 = vmatpush1.msra.mxu0 0.0
      %943 = vmatprep.subr.mxu0 0.0
      %944 = vmatpush1.msra.mxu0 0.0
      %945 = vmatprep.subr.mxu0 0.0
      %946 = vmatpush1.msra.mxu0 0.0
      %947 = vmatprep.subr.mxu0 0.0
      %948 = vmatpush1.msra.mxu0 0.0
      %949 = vmatprep.subr.mxu0 0.0
      %950 = vmatpush1.msra.mxu0 0.0
      %951 = vmatprep.subr.mxu0 0.0
      %952 = vmatpush1.msra.mxu0 0.0
      %953 = vmatprep.subr.mxu0 0.0
      %954 = vmatpush1.msra.mxu0 0.0
      %955 = vmatprep.subr.mxu0 0.0
      %956 = vmatpush1.msra.mxu0 0.0
      %957 = vmatprep.subr.mxu0 0.0
      %958 = vmatpush1.msra.mxu0 0.0
      %959 = vmatprep.subr.mxu0 0.0
      %960 = vmatpush1.msra.mxu0 0.0
      %961 = vmatprep.mubr.f32.mxu0 0.0
      %962 = vmatmul.mubr.f32.gmra.mrb[0].mxu0 %v895
      %v963 = vpop.f32.mrb[0].mxu0
      %v964 = vadd.f32 0.0, %v963
      %v965 = vpop.f32.mrb[0].mxu0
      %966 = vdwg.mxu0
      %v968 = vrot.slane %v964, 1
      %v970 = vadd.f32 %v287, %v968
      %v971 = vmax.f32 %v970, 0.0
      %vm972 = vcmp.gt.s32.totalorder %v205, 7
      %v973 = vsel %vm972, 1, 0
      %vm974 = vcmp.eq.s32.totalorder %v973, 1
      %v976 = vrot.slane %v971, 7
      %v978 = vsel %vm974, %v976, 0.0
      %979 = vst.msk [vmem:[#allocation2 + $0x7] sm:$0x1] %vm370, %v978
      %v980 = vld [vmem:[#allocation2] sm:$0xff]
      %v981 = vld [vmem:[%s4] sm:$0xff]
      %v982 = vld [vmem:[%s4 + $0x8] sm:$0xff]
      %v983 = vld [vmem:[%s4 + $0x10] sm:$0xff]
      %v984 = vld [vmem:[%s4 + $0x18] sm:$0xff]
      %v986 = vsel %vm290, %v980, 0
      %988 = vmatprep.subr.mxu0 0.0
      %989 = vmatpush1.msra.mxu0 %v981
      %990 = vmatprep.subr.mxu0 0.0
      %991 = vmatpush1.msra.mxu0 %v982
      %992 = vmatprep.subr.mxu0 0.0
      %993 = vmatpush1.msra.mxu0 %v983
      %994 = vmatprep.subr.mxu0 0.0
      %995 = vmatpush1.msra.mxu0 %v984
      %996 = vmatprep.subr.mxu0 0.0
      %997 = vmatpush1.msra.mxu0 0.0
      %998 = vmatprep.subr.mxu0 0.0
      %999 = vmatpush1.msra.mxu0 0.0
      %1000 = vmatprep.subr.mxu0 0.0
      %1001 = vmatpush1.msra.mxu0 0.0
      %1002 = vmatprep.subr.mxu0 0.0
      %1003 = vmatpush1.msra.mxu0 0.0
      %1004 = vmatprep.subr.mxu0 0.0
      %1005 = vmatpush1.msra.mxu0 0.0
      %1006 = vmatprep.subr.mxu0 0.0
      %1007 = vmatpush1.msra.mxu0 0.0
      %1008 = vmatprep.subr.mxu0 0.0
      %1009 = vmatpush1.msra.mxu0 0.0
      %1010 = vmatprep.subr.mxu0 0.0
      %1011 = vmatpush1.msra.mxu0 0.0
      %1012 = vmatprep.subr.mxu0 0.0
      %1013 = vmatpush1.msra.mxu0 0.0
      %1014 = vmatprep.subr.mxu0 0.0
      %1015 = vmatpush1.msra.mxu0 0.0
      %1016 = vmatprep.subr.mxu0 0.0
      %1017 = vmatpush1.msra.mxu0 0.0
      %1018 = vmatprep.subr.mxu0 0.0
      %1019 = vmatpush1.msra.mxu0 0.0
      %1020 = vmatprep.subr.mxu0 0.0
      %1021 = vmatpush1.msra.mxu0 0.0
      %1022 = vmatprep.subr.mxu0 0.0
      %1023 = vmatpush1.msra.mxu0 0.0
      %1024 = vmatprep.subr.mxu0 0.0
      %1025 = vmatpush1.msra.mxu0 0.0
      %1026 = vmatprep.subr.mxu0 0.0
      %1027 = vmatpush1.msra.mxu0 0.0
      %1028 = vmatprep.subr.mxu0 0.0
      %1029 = vmatpush1.msra.mxu0 0.0
      %1030 = vmatprep.subr.mxu0 0.0
      %1031 = vmatpush1.msra.mxu0 0.0
      %1032 = vmatprep.subr.mxu0 0.0
      %1033 = vmatpush1.msra.mxu0 0.0
      %1034 = vmatprep.subr.mxu0 0.0
      %1035 = vmatpush1.msra.mxu0 0.0
      %1036 = vmatprep.subr.mxu0 0.0
      %1037 = vmatpush1.msra.mxu0 0.0
      %1038 = vmatprep.subr.mxu0 0.0
      %1039 = vmatpush1.msra.mxu0 0.0
      %1040 = vmatprep.subr.mxu0 0.0
      %1041 = vmatpush1.msra.mxu0 0.0
      %1042 = vmatprep.subr.mxu0 0.0
      %1043 = vmatpush1.msra.mxu0 0.0
      %1044 = vmatprep.subr.mxu0 0.0
      %1045 = vmatpush1.msra.mxu0 0.0
      %1046 = vmatprep.subr.mxu0 0.0
      %1047 = vmatpush1.msra.mxu0 0.0
      %1048 = vmatprep.subr.mxu0 0.0
      %1049 = vmatpush1.msra.mxu0 0.0
      %1050 = vmatprep.subr.mxu0 0.0
      %1051 = vmatpush1.msra.mxu0 0.0
      %1052 = vmatprep.mubr.f32.mxu0 0.0
      %1053 = vmatmul.mubr.f32.gmra.mrb[0].mxu0 %v986
      %v1054 = vpop.f32.mrb[0].mxu0
      %v1055 = vadd.f32 0.0, %v1054
      %v1056 = vpop.f32.mrb[0].mxu0
      %1057 = vdwg.mxu0
      %v1058 = vtanh.pop %v1055
      %vm1059 = vcmask 15360
      %1060 = vst.msk [vmem:[%s199] sm:$0xff] %vm1059, %v1058
      %p1061 = scmp.lt.s32.totalorder %s22, 1
      %s1062 = scalar_select %p1061, %s22, 1
      %s1063 = smul.addr %s1062, 8
      %s1064 = scalar_lea.vmem %s5, %s1063
      // Predicated region
      $region37: #{tpu_custom_call.1} parent=35 // pred_check
        %p1065 = pneg %p129
      $region38: #{tpu_custom_call.1} parent=35 // pred_check_branch
        %1067 = sbr.rel (%p1065) target = $region40
      $region39: #{tpu_custom_call.1} parent=35 // pred_region
        _
      $region40: #{tpu_custom_call.1} parent=35 // pred_fallthru
        _
    $region36: #{tpu_custom_call.1} parent=5 // pred_fallthru
      _
    %p1068 = scmp.le.s32.totalorder 2, %s17
    // Predicated region
    $region41: #{tpu_custom_call.1} parent=5 // pred_check
      %p1069 = pneg %p1068
    $region42: #{tpu_custom_call.1} parent=5 // pred_check_branch
      %1071 = sbr.rel (%p1069) target = $region44
    $region43: #{tpu_custom_call.1} parent=5 // pred_region
      %s1072 = ssub.s32 %s17, 2
      // Predicated region
      $region45: #{tpu_custom_call.1} parent=43 // pred_check
        %p1073 = pneg %p135
      $region46: #{tpu_custom_call.1} parent=43 // pred_check_branch
        %1075 = sbr.rel (%p1073) target = $region48
      $region47: #{tpu_custom_call.1} parent=43 // pred_region
        %p1076 = scmp.lt.s32.totalorder %s23, 1
        %s1077 = scalar_select %p1076, %s23, 1
        %s1078 = smul.addr %s1077, 8
        %s1079 = scalar_lea.vmem %s5, %s1078
      $region48: #{tpu_custom_call.1} parent=43 // pred_fallthru
        _
    $region44: #{tpu_custom_call.1} parent=5 // pred_fallthru
      _
  $region6: #{tpu_custom_call.1} parent=0 // loop_footer
    %s21 = sadd.s32 1, %s17
  $region7: #{tpu_custom_call.1} parent=0 // loop_footer_branch
    %16 = sbr.rel target = $region3
  $region8: #{tpu_custom_call.1} parent=0 // loop_exit
    _

</llo_original>
